<compile_context>
chip_gen: v6e
topology: v6e:2x2x1
jax: 0.10.0
libtpu: 0.0.40
codegen_flags: <defaults>
</compile_context>

<pallas_src>
import jax
import jax.numpy as jnp
from jax.experimental import pallas as pl
from jax.experimental.pallas import tpu as pltpu


def _round_up(x, m):
    return ((x + m - 1) // m) * m


def _cdiv(a, b):
    return (a + b - 1) // b


def _channel_pow_sum(x, p):
    """sum over the channel axis (axis=1) of |x|**p; p specialized statically."""
    if p == 2.0:
        return jnp.sum(x * x, axis=1)
    if p == 1.0:
        return jnp.sum(jnp.abs(x), axis=1)
    if float(p).is_integer() and 2.0 < p <= 4.0:
        a = jnp.abs(x)
        y = a
        for _ in range(int(p) - 1):
            y = y * a
        return jnp.sum(y, axis=1)
    # generic float exponent (rare path; goes through EUP pow)
    return jnp.sum(jnp.abs(x) ** p, axis=1)


def _make_kernel(p, N, HW, TB, HW_TILE, hw_blocks_per_split,
                 need_row_mask, need_lane_mask):
    def kernel(s_ref, t_ref, sss_out, stt_out, sst_out,
               sss_acc, stt_acc, sst_acc):
        i = pl.program_id(0)      # batch block
        sp = pl.program_id(1)     # spatial split (parallel)
        j = pl.program_id(2)      # spatial chunk within split (reduction)

        @pl.when(j == 0)
        def _():
            sss_acc[...] = jnp.zeros_like(sss_acc)
            stt_acc[...] = jnp.zeros_like(stt_acc)
            sst_acc[...] = jnp.zeros_like(sst_acc)

        s = s_ref[...].astype(jnp.float32)   # (TB, C, HW_TILE)
        t = t_ref[...].astype(jnp.float32)

        am_s = _channel_pow_sum(s, p)        # (TB, HW_TILE)
        am_t = _channel_pow_sum(t, p)

        # Mask ragged tails (batch and/or spatial) instead of padding in HBM.
        if need_row_mask or need_lane_mask:
            valid = None
            if need_lane_mask:
                blk = sp * hw_blocks_per_split + j
                lane = jax.lax.broadcasted_iota(jnp.int32, (TB, HW_TILE), 1)
                valid = (blk * HW_TILE + lane) < HW
            if need_row_mask:
                row = jax.lax.broadcasted_iota(jnp.int32, (TB, HW_TILE), 0)
                rv = (i * TB + row) < N
                valid = rv if valid is None else (valid & rv)
            am_s = jnp.where(valid, am_s, 0.0)
            am_t = jnp.where(valid, am_t, 0.0)

        # Lane-wise accumulation (pure VPU); cross-lane reduce only at the end.
        sss_acc[...] += am_s * am_s
        stt_acc[...] += am_t * am_t
        sst_acc[...] += am_s * am_t

        @pl.when(j == pl.num_programs(2) - 1)
        def _():
            sss_out[...] = jnp.sum(sss_acc[...], axis=-1)[None, None, None, :]
            stt_out[...] = jnp.sum(stt_acc[...], axis=-1)[None, None, None, :]
            sst_out[...] = jnp.sum(sst_acc[...], axis=-1)[None, None, None, :]

    return kernel


def _choose_tiling(N, C, HW, itemsize, target_bytes):
    """Pick (samples-per-block TB, spatial tile HW_TILE), sizing against the
    layout-PADDED VMEM footprint (C -> sublane multiple, HW tile -> 128 lanes)."""
    sublane = {1: 32, 2: 16, 4: 8}.get(itemsize, 8)
    c_pad = _round_up(C, sublane)
    hw_full_pad = _round_up(HW, 128)
    per_sample_padded = c_pad * hw_full_pad * itemsize
    if per_sample_padded >= target_bytes:
        # One sample per block; tile the spatial axis in 128-lane multiples.
        tb = 1
        lanes = max(128, target_bytes // (c_pad * itemsize))
        hw_tile = (lanes // 128) * 128
        if hw_tile >= HW:
            hw_tile = HW
    else:
        # Small maps: full spatial extent, batch samples to amortize per-step cost.
        hw_tile = HW
        tb = min(N, max(1, target_bytes // per_sample_padded))
    # Keep >= 2 batch blocks whenever N >= 2 so both v7x TensorCores get work.
    if N >= 2:
        tb = min(tb, _cdiv(N, 2))
    return int(tb), int(hw_tile)


def attention_loss(fm_s, fm_t, p=2.0, eps=1e-6, target_block_bytes=4 << 20):
    """Pallas equivalent of AttentionLoss(p)(fm_s, fm_t) for NCHW inputs."""
    assert fm_s.shape == fm_t.shape
    N, C, H, W = fm_s.shape
    HW = H * W

    s = fm_s.reshape(N, C, HW)
    t = fm_t.reshape(N, C, HW)

    itemsize = jnp.dtype(fm_s.dtype).itemsize
    # Clamp so 2 inputs x 2 pipeline buffers always fit every generation's VMEM.
    target = int(min(max(int(target_block_bytes), 1 << 12), 8 << 20))
    TB, HW_TILE = _choose_tiling(N, C, HW, itemsize, target)

    n_bb = _cdiv(N, TB)                 # batch blocks (parallel)
    n_hw_blocks = _cdiv(HW, HW_TILE)    # spatial chunks total
    # With only one batch block, split the spatial reduction 2-way so both
    # TensorCores (v7x) contribute HBM bandwidth.
    n_splits = 2 if (n_bb == 1 and n_hw_blocks >= 2) else 1
    hbs = _cdiv(n_hw_blocks, n_splits)  # spatial chunks per split

    need_row_mask = (N % TB) != 0
    need_lane_mask = ((HW % HW_TILE) != 0) or (n_splits * hbs != n_hw_blocks)

    kernel = _make_kernel(float(p), N, HW, TB, HW_TILE, hbs,
                          need_row_mask, need_lane_mask)

    last_blk = n_hw_blocks - 1
    if n_splits * hbs != n_hw_blocks:
        # Overflow chunks (odd n_hw_blocks split 2 ways) clamp to the last valid
        # block; the in-kernel lane mask zeroes their contribution entirely.
        def in_map(i, sp, j):
            return (i, 0, jnp.minimum(sp * hbs + j, last_blk))
    else:
        def in_map(i, sp, j):
            return (i, 0, sp * hbs + j)

    def out_map(i, sp, j):
        return (i, sp, 0, 0)

    # Explicit VMEM budget: 2 inputs x 2 pipeline buffers of the padded block,
    # plus the three f32 lane-wise accumulators.
    sublane = {1: 32, 2: 16, 4: 8}.get(itemsize, 8)
    block_bytes = TB * _round_up(C, sublane) * _round_up(HW_TILE, 128) * itemsize
    acc_bytes = 3 * TB * _round_up(HW_TILE, 128) * 4
    vmem_needed = 2 * 2 * block_bytes + acc_bytes + (2 << 20)
    vmem_limit = int(min(max(vmem_needed, 32 << 20), 48 << 20))

    out_sds = jax.ShapeDtypeStruct((n_bb, n_splits, 1, TB), jnp.float32)
    flops = 6 * N * C * HW
    transc = 0 if float(p) in (1.0, 2.0, 3.0, 4.0) else 2 * N * C * HW
    cost = pl.CostEstimate(flops=int(flops), transcendentals=int(transc),
                           bytes_accessed=int(2 * N * C * HW * itemsize))

    sss, stt, sst = pl.pallas_call(
        kernel,
        out_shape=(out_sds, out_sds, out_sds),
        grid_spec=pltpu.PrefetchScalarGridSpec(
            num_scalar_prefetch=0,
            grid=(n_bb, n_splits, hbs),
            in_specs=[
                pl.BlockSpec((TB, C, HW_TILE), in_map),
                pl.BlockSpec((TB, C, HW_TILE), in_map),
            ],
            out_specs=[
                pl.BlockSpec((1, 1, 1, TB), out_map),
                pl.BlockSpec((1, 1, 1, TB), out_map),
                pl.BlockSpec((1, 1, 1, TB), out_map),
            ],
            scratch_shapes=[
                pltpu.VMEM((TB, HW_TILE), jnp.float32),   # sum(am_s^2) lane-wise
                pltpu.VMEM((TB, HW_TILE), jnp.float32),   # sum(am_t^2) lane-wise
                pltpu.VMEM((TB, HW_TILE), jnp.float32),   # sum(am_s*am_t) lane-wise
            ],
        ),
        compiler_params=pltpu.CompilerParams(
            dimension_semantics=("parallel", "parallel", "arbitrary"),
            vmem_limit_bytes=vmem_limit,
        ),
        cost_estimate=cost,
    )(s, t)

    # O(N) finalize in plain JAX: combine splits, slice off masked batch rows,
    # normalize and take the MSE mean over N*1*H*W elements.
    sss = jnp.sum(sss, axis=1).reshape(-1)[:N]
    stt = jnp.sum(stt, axis=1).reshape(-1)[:N]
    sst = jnp.sum(sst, axis=1).reshape(-1)[:N]
    inv_ns = 1.0 / (jnp.sqrt(sss) + eps)
    inv_nt = 1.0 / (jnp.sqrt(stt) + eps)
    per_sample = (sss * inv_ns * inv_ns
                  + stt * inv_nt * inv_nt
                  - 2.0 * sst * inv_ns * inv_nt)
    return jnp.sum(per_sample) / jnp.float32(N * HW)


def _reference_attention_loss(fm_s, fm_t, p=2.0, eps=1e-6):
    def attention_map(fm):
        am = jnp.sum(jnp.abs(fm) ** p, axis=1, keepdims=True)
        norm = jnp.sqrt(jnp.sum(am * am, axis=(2, 3), keepdims=True))
        return am / (norm + eps)

    a_s = attention_map(fm_s)
    a_t = attention_map(fm_t)
    return jnp.mean((a_s - a_t) ** 2)


if __name__ == "__main__":
    key = jax.random.PRNGKey(0)
    k1, k2, k3, k4, k5, k6 = jax.random.split(key, 6)

    # 1) Small-map path: full spatial block, TB=2 (ragged batch mask: N=3).
    N, C, H, W = 3, 4, 16, 16
    fm_s = jax.random.normal(k1, (N, C, H, W), dtype=jnp.float32)
    fm_t = jax.random.normal(k2, (N, C, H, W), dtype=jnp.float32)
    loss = jax.block_until_ready(attention_loss(fm_s, fm_t, p=2.0))
    ref = jax.block_until_ready(_reference_attention_loss(fm_s, fm_t, p=2.0))
    assert jnp.allclose(loss, ref, rtol=3e-4, atol=1e-6), (loss, ref)

    # 2) Spatial tiling with a ragged lane tail (HW=324, tile=128), p=1.
    N2, C2, H2, W2 = 3, 8, 18, 18
    fm_s2 = jax.random.normal(k3, (N2, C2, H2, W2), dtype=jnp.float32)
    fm_t2 = jax.random.normal(k4, (N2, C2, H2, W2), dtype=jnp.float32)
    loss2 = jax.block_until_ready(
        attention_loss(fm_s2, fm_t2, p=1.0, target_block_bytes=4096))
    ref2 = jax.block_until_ready(_reference_attention_loss(fm_s2, fm_t2, p=1.0))
    assert jnp.allclose(loss2, ref2, rtol=3e-4, atol=1e-6), (loss2, ref2)

    # 3) N=1: 2-way parallel spatial split (dual-core path) with an odd number
    #    of spatial chunks (exercises the clamped overflow block + lane mask).
    N3, C3, H3, W3 = 1, 8, 19, 19
    fm_s3 = jax.random.normal(k5, (N3, C3, H3, W3), dtype=jnp.float32)
    fm_t3 = jax.random.normal(k6, (N3, C3, H3, W3), dtype=jnp.float32)
    loss3 = jax.block_until_ready(
        attention_loss(fm_s3, fm_t3, p=2.0, target_block_bytes=4096))
    ref3 = jax.block_until_ready(_reference_attention_loss(fm_s3, fm_t3, p=2.0))
    assert jnp.allclose(loss3, ref3, rtol=3e-4, atol=1e-6), (loss3, ref3)

    print("KERNEL_OK")
</pallas_src>

<mosaic_0001>
module attributes {stable_mosaic.version = 11 : i64} {
  func.func @kernel(%arg0: i32, %arg1: i32, %arg2: i32, %arg3: memref<2x4x256xf32, #tpu.memory_space<vmem>>, %arg4: memref<2x4x256xf32, #tpu.memory_space<vmem>>, %arg5: memref<1x1x1x2xf32, #tpu.memory_space<vmem>>, %arg6: memref<1x1x1x2xf32, #tpu.memory_space<vmem>>, %arg7: memref<1x1x1x2xf32, #tpu.memory_space<vmem>>, %arg8: memref<2x256xf32, #tpu.memory_space<vmem>>, %arg9: memref<2x256xf32, #tpu.memory_space<vmem>>, %arg10: memref<2x256xf32, #tpu.memory_space<vmem>>) attributes {dimension_semantics = [#tpu.dimension_semantics<parallel>, #tpu.dimension_semantics<parallel>, #tpu.dimension_semantics<arbitrary>], iteration_bounds = array<i64: 2, 1, 1>, scalar_prefetch = 0 : i64, scratch_operands = 3 : i64, tpu.core_type = #tpu.core_type<tc>, window_params = [{transform_indices = @transform_0, window_bounds = array<i64: 2, 4, 256>}, {transform_indices = @transform_1, window_bounds = array<i64: 2, 4, 256>}, {transform_indices = @transform_2, window_bounds = array<i64: 1, 1, 1, 2>}, {transform_indices = @transform_3, window_bounds = array<i64: 1, 1, 1, 2>}, {transform_indices = @transform_4, window_bounds = array<i64: 1, 1, 1, 2>}]} {
    %c0_i32 = arith.constant 0 : i32
    %0 = arith.cmpi eq, %arg2, %c0_i32 : i32
    %1 = arith.extui %0 : i1 to i32
    %c0_i32_0 = arith.constant 0 : i32
    %2 = arith.cmpi ne, %1, %c0_i32_0 : i32
    scf.if %2 {
      %cst_23 = arith.constant 0.000000e+00 : f32
      %34 = vector.broadcast %cst_23 : f32 to vector<2x256xf32>
      %c0_24 = arith.constant 0 : index
      %c0_25 = arith.constant 0 : index
      %35 = vector.load %arg8[%c0_24, %c0_25] : memref<2x256xf32, #tpu.memory_space<vmem>>, vector<2x256xf32>
      tpu.vector_store %arg8[%c0_24, %c0_25], %34 {strides = array<i32>} : memref<2x256xf32, #tpu.memory_space<vmem>>, vector<2x256xf32>,
      %cst_26 = arith.constant 0.000000e+00 : f32
      %36 = vector.broadcast %cst_26 : f32 to vector<2x256xf32>
      %c0_27 = arith.constant 0 : index
      %c0_28 = arith.constant 0 : index
      %37 = vector.load %arg9[%c0_27, %c0_28] : memref<2x256xf32, #tpu.memory_space<vmem>>, vector<2x256xf32>
      tpu.vector_store %arg9[%c0_27, %c0_28], %36 {strides = array<i32>} : memref<2x256xf32, #tpu.memory_space<vmem>>, vector<2x256xf32>,
      %cst_29 = arith.constant 0.000000e+00 : f32
      %38 = vector.broadcast %cst_29 : f32 to vector<2x256xf32>
      %c0_30 = arith.constant 0 : index
      %c0_31 = arith.constant 0 : index
      %39 = vector.load %arg10[%c0_30, %c0_31] : memref<2x256xf32, #tpu.memory_space<vmem>>, vector<2x256xf32>
      tpu.vector_store %arg10[%c0_30, %c0_31], %38 {strides = array<i32>} : memref<2x256xf32, #tpu.memory_space<vmem>>, vector<2x256xf32>,
    } else {
    }
    %c0 = arith.constant 0 : index
    %c0_1 = arith.constant 0 : index
    %c0_2 = arith.constant 0 : index
    %3 = vector.load %arg3[%c0, %c0_1, %c0_2] : memref<2x4x256xf32, #tpu.memory_space<vmem>>, vector<2x4x256xf32>
    %c0_3 = arith.constant 0 : index
    %c0_4 = arith.constant 0 : index
    %c0_5 = arith.constant 0 : index
    %4 = vector.load %arg4[%c0_3, %c0_4, %c0_5] : memref<2x4x256xf32, #tpu.memory_space<vmem>>, vector<2x4x256xf32>
    %5 = arith.mulf %3, %3 : vector<2x4x256xf32>
    %cst = arith.constant dense<0.000000e+00> : vector<2x256xf32>
    %6 = vector.multi_reduction <add>, %5, %cst [1] : vector<2x4x256xf32> to vector<2x256xf32>
    %7 = arith.mulf %4, %4 : vector<2x4x256xf32>
    %cst_6 = arith.constant dense<0.000000e+00> : vector<2x256xf32>
    %8 = vector.multi_reduction <add>, %7, %cst_6 [1] : vector<2x4x256xf32> to vector<2x256xf32>
    %9 = tpu.iota {dimensions = array<i32: 0>} : vector<2x256xi32>
    %c2_i32 = arith.constant 2 : i32
    %10 = arith.muli %arg0, %c2_i32 : i32
    %11 = vector.broadcast %10 : i32 to vector<2x256xi32>
    %12 = arith.addi %11, %9 : vector<2x256xi32>
    %c3_i32 = arith.constant 3 : i32
    %13 = vector.broadcast %c3_i32 : i32 to vector<2x256xi32>
    %14 = arith.cmpi slt, %12, %13 : vector<2x256xi32>
    %cst_7 = arith.constant 0.000000e+00 : f32
    %15 = vector.broadcast %cst_7 : f32 to vector<2x256xf32>
    %16 = arith.select %14, %6, %15 : vector<2x256xi1>, vector<2x256xf32>
    %cst_8 = arith.constant 0.000000e+00 : f32
    %17 = vector.broadcast %cst_8 : f32 to vector<2x256xf32>
    %18 = arith.select %14, %8, %17 : vector<2x256xi1>, vector<2x256xf32>
    %c0_9 = arith.constant 0 : index
    %c0_10 = arith.constant 0 : index
    %19 = vector.load %arg8[%c0_9, %c0_10] : memref<2x256xf32, #tpu.memory_space<vmem>>, vector<2x256xf32>
    %20 = arith.mulf %16, %16 : vector<2x256xf32>
    %21 = arith.addf %19, %20 : vector<2x256xf32>
    %c0_11 = arith.constant 0 : index
    %c0_12 = arith.constant 0 : index
    %22 = vector.load %arg8[%c0_11, %c0_12] : memref<2x256xf32, #tpu.memory_space<vmem>>, vector<2x256xf32>
    tpu.vector_store %arg8[%c0_11, %c0_12], %21 {strides = array<i32>} : memref<2x256xf32, #tpu.memory_space<vmem>>, vector<2x256xf32>,
    %c0_13 = arith.constant 0 : index
    %c0_14 = arith.constant 0 : index
    %23 = vector.load %arg9[%c0_13, %c0_14] : memref<2x256xf32, #tpu.memory_space<vmem>>, vector<2x256xf32>
    %24 = arith.mulf %18, %18 : vector<2x256xf32>
    %25 = arith.addf %23, %24 : vector<2x256xf32>
    %c0_15 = arith.constant 0 : index
    %c0_16 = arith.constant 0 : index
    %26 = vector.load %arg9[%c0_15, %c0_16] : memref<2x256xf32, #tpu.memory_space<vmem>>, vector<2x256xf32>
    tpu.vector_store %arg9[%c0_15, %c0_16], %25 {strides = array<i32>} : memref<2x256xf32, #tpu.memory_space<vmem>>, vector<2x256xf32>,
    %c0_17 = arith.constant 0 : index
    %c0_18 = arith.constant 0 : index
    %27 = vector.load %arg10[%c0_17, %c0_18] : memref<2x256xf32, #tpu.memory_space<vmem>>, vector<2x256xf32>
    %28 = arith.mulf %16, %18 : vector<2x256xf32>
    %29 = arith.addf %27, %28 : vector<2x256xf32>
    %c0_19 = arith.constant 0 : index
    %c0_20 = arith.constant 0 : index
    %30 = vector.load %arg10[%c0_19, %c0_20] : memref<2x256xf32, #tpu.memory_space<vmem>>, vector<2x256xf32>
    tpu.vector_store %arg10[%c0_19, %c0_20], %29 {strides = array<i32>} : memref<2x256xf32, #tpu.memory_space<vmem>>, vector<2x256xf32>,
    %c0_i32_21 = arith.constant 0 : i32
    %31 = arith.cmpi eq, %arg2, %c0_i32_21 : i32
    %32 = arith.extui %31 : i1 to i32
    %c0_i32_22 = arith.constant 0 : i32
    %33 = arith.cmpi ne, %32, %c0_i32_22 : i32
    scf.if %33 {
      %c0_23 = arith.constant 0 : index
      %c0_24 = arith.constant 0 : index
      %34 = vector.load %arg8[%c0_23, %c0_24] : memref<2x256xf32, #tpu.memory_space<vmem>>, vector<2x256xf32>
      %cst_25 = arith.constant dense<0.000000e+00> : vector<2xf32>
      %35 = vector.multi_reduction <add>, %34, %cst_25 [1] : vector<2x256xf32> to vector<2xf32>
      %36 = vector.shape_cast %35 : vector<2xf32> to vector<1x1x1x2xf32>
      %c0_26 = arith.constant 0 : index
      %c0_27 = arith.constant 0 : index
      %c0_28 = arith.constant 0 : index
      %c0_29 = arith.constant 0 : index
      %37 = vector.load %arg5[%c0_26, %c0_27, %c0_28, %c0_29] : memref<1x1x1x2xf32, #tpu.memory_space<vmem>>, vector<1x1x1x2xf32>
      tpu.vector_store %arg5[%c0_26, %c0_27, %c0_28, %c0_29], %36 {strides = array<i32>} : memref<1x1x1x2xf32, #tpu.memory_space<vmem>>, vector<1x1x1x2xf32>,
      %c0_30 = arith.constant 0 : index
      %c0_31 = arith.constant 0 : index
      %38 = vector.load %arg9[%c0_30, %c0_31] : memref<2x256xf32, #tpu.memory_space<vmem>>, vector<2x256xf32>
      %cst_32 = arith.constant dense<0.000000e+00> : vector<2xf32>
      %39 = vector.multi_reduction <add>, %38, %cst_32 [1] : vector<2x256xf32> to vector<2xf32>
      %40 = vector.shape_cast %39 : vector<2xf32> to vector<1x1x1x2xf32>
      %c0_33 = arith.constant 0 : index
      %c0_34 = arith.constant 0 : index
      %c0_35 = arith.constant 0 : index
      %c0_36 = arith.constant 0 : index
      %41 = vector.load %arg6[%c0_33, %c0_34, %c0_35, %c0_36] : memref<1x1x1x2xf32, #tpu.memory_space<vmem>>, vector<1x1x1x2xf32>
      tpu.vector_store %arg6[%c0_33, %c0_34, %c0_35, %c0_36], %40 {strides = array<i32>} : memref<1x1x1x2xf32, #tpu.memory_space<vmem>>, vector<1x1x1x2xf32>,
      %c0_37 = arith.constant 0 : index
      %c0_38 = arith.constant 0 : index
      %42 = vector.load %arg10[%c0_37, %c0_38] : memref<2x256xf32, #tpu.memory_space<vmem>>, vector<2x256xf32>
      %cst_39 = arith.constant dense<0.000000e+00> : vector<2xf32>
      %43 = vector.multi_reduction <add>, %42, %cst_39 [1] : vector<2x256xf32> to vector<2xf32>
      %44 = vector.shape_cast %43 : vector<2xf32> to vector<1x1x1x2xf32>
      %c0_40 = arith.constant 0 : index
      %c0_41 = arith.constant 0 : index
      %c0_42 = arith.constant 0 : index
      %c0_43 = arith.constant 0 : index
      %45 = vector.load %arg7[%c0_40, %c0_41, %c0_42, %c0_43] : memref<1x1x1x2xf32, #tpu.memory_space<vmem>>, vector<1x1x1x2xf32>
      tpu.vector_store %arg7[%c0_40, %c0_41, %c0_42, %c0_43], %44 {strides = array<i32>} : memref<1x1x1x2xf32, #tpu.memory_space<vmem>>, vector<1x1x1x2xf32>,
    } else {
    }
    return
  }
  func.func @transform_0(%arg0: i32, %arg1: i32, %arg2: i32) -> (i32, i32, i32) {
    %c1_i32 = arith.constant 1 : i32
    %0 = arith.muli %arg1, %c1_i32 : i32
    %1 = arith.addi %0, %arg2 : i32
    %c0_i32 = arith.constant 0 : i32
    %c0_i32_0 = arith.constant 0 : i32
    return %arg0, %c0_i32, %1 : i32, i32, i32
  }
  func.func @transform_1(%arg0: i32, %arg1: i32, %arg2: i32) -> (i32, i32, i32) {
    %c1_i32 = arith.constant 1 : i32
    %0 = arith.muli %arg1, %c1_i32 : i32
    %1 = arith.addi %0, %arg2 : i32
    %c0_i32 = arith.constant 0 : i32
    %c0_i32_0 = arith.constant 0 : i32
    return %arg0, %c0_i32, %1 : i32, i32, i32
  }
  func.func @transform_2(%arg0: i32, %arg1: i32, %arg2: i32) -> (i32, i32, i32, i32) {
    %c0_i32 = arith.constant 0 : i32
    %c0_i32_0 = arith.constant 0 : i32
    %c0_i32_1 = arith.constant 0 : i32
    return %arg0, %arg1, %c0_i32, %c0_i32_0 : i32, i32, i32, i32
  }
  func.func @transform_3(%arg0: i32, %arg1: i32, %arg2: i32) -> (i32, i32, i32, i32) {
    %c0_i32 = arith.constant 0 : i32
    %c0_i32_0 = arith.constant 0 : i32
    %c0_i32_1 = arith.constant 0 : i32
    return %arg0, %arg1, %c0_i32, %c0_i32_0 : i32, i32, i32, i32
  }
  func.func @transform_4(%arg0: i32, %arg1: i32, %arg2: i32) -> (i32, i32, i32, i32) {
    %c0_i32 = arith.constant 0 : i32
    %c0_i32_0 = arith.constant 0 : i32
    %c0_i32_1 = arith.constant 0 : i32
    return %arg0, %arg1, %c0_i32, %c0_i32_0 : i32, i32, i32, i32
  }
}

</mosaic_0001>

<llo_original>
// kernel: tpu_custom_call.1
$region0: #{tpu_custom_call.1}
  #allocation0 [shape = 'u32[]', space=smem, size = 0x4, offset = 0x4, fixed_abs, tag = 'smem constant byte address 0x4 - core index']
  #allocation1 [shape = 'u32[144,128]{1,0:T(1,128)}', space=vmem, size = 0x12000, scoped, tag = 'internal scratch']
  #allocation2 [shape = 'f32[2,256]{1,0:T(2,128)}', space=vmem, size = 0x800, scoped, tag = 'scratch operand']
  #allocation3 [shape = 'f32[2,256]{1,0:T(2,128)}', space=vmem, size = 0x800, scoped, tag = 'scratch operand']
  #allocation4 [shape = 'f32[2,256]{1,0:T(2,128)}', space=vmem, size = 0x800, scoped, tag = 'scratch operand']
  %s0 = inlined_call_operand.hbm [shape: f32[3,4,256], index: 0, kind: input, shape index: {}]
  %s1 = inlined_call_operand.hbm [shape: f32[3,4,256], index: 1, kind: input, shape index: {}]
  %s2 = inlined_call_operand.hbm [shape: f32[2,1,1,2], index: 2, kind: output, shape index: {0}]
  %s3 = inlined_call_operand.hbm [shape: f32[2,1,1,2], index: 3, kind: output, shape index: {1}]
  %s4 = inlined_call_operand.hbm [shape: f32[2,1,1,2], index: 4, kind: output, shape index: {2}]
  %5 = xla_tuple %s2, %s3, %s4
  %s6 = sld [smem:[#allocation0]]
  $region73: #{tpu_custom_call.1} parent=0
    _
  %s8 = ssub.s32 1, %s6
  %s9 = scalar_select 0, %s8, %s6
  $region1: #{tpu_custom_call.1} parent=0
    #allocation5 [shape = 'u8[16384]{0}', space=vmem, size = 0x4000, scoped, tag = 'input window, operand 0']
    #allocation6 [shape = 's32[2]{0}', space=sflag, size = 0x8, scoped, tag = 'scoped memory for tpu_custom_call.1']
    #allocation7 [shape = 's32[2]{0}', space=sflag, size = 0x8, scoped, tag = 'scoped memory for tpu_custom_call.1']
    #allocation8 [shape = 'u8[16384]{0}', space=vmem, size = 0x4000, scoped, tag = 'input window, operand 1']
    #allocation9 [shape = 's32[2]{0}', space=sflag, size = 0x8, scoped, tag = 'scoped memory for tpu_custom_call.1']
    #allocation10 [shape = 'u8[1024]{0}', space=vmem, size = 0x400, scoped, tag = 'output window, operand 0']
    #allocation11 [shape = 'u8[1024]{0}', space=vmem, size = 0x400, scoped, tag = 'output window, operand 1']
    #allocation12 [shape = 's32[2]{0}', space=sflag, size = 0x8, scoped, tag = 'scoped memory for tpu_custom_call.1']
    #allocation13 [shape = 'u8[1024]{0}', space=vmem, size = 0x400, scoped, tag = 'output window, operand 2']
    %10 = vsyncpa [#allocation6], 0
    %s11 = scalar_lea.sflag [#allocation6], 1
    %12 = vsyncpa %s11, 0
    %13 = vsyncpa [#allocation9], 0
    %s14 = scalar_lea.sflag [#allocation9], 1
    %15 = vsyncpa %s14, 0
    %16 = vsyncpa [#allocation7], 0
    %s17 = scalar_lea.sflag [#allocation7], 1
    %18 = vsyncpa %s17, 0
    %19 = vsyncpa [#allocation12], 0
    %s20 = scalar_lea.sflag [#allocation12], 1
    %21 = vsyncpa %s20, 0
    loop: start=0, step=1, limit=4
    $region2: #{tpu_custom_call.1} parent=1 // loop_pre_header
      _
    $region3: #{tpu_custom_call.1} parent=1 // loop_header
      %s23 = sphi 0, %s27
      %p24 = scmp.ge.s32.totalorder %s23, 4
      %s30 = sphi 0, %s49
      %s31 = sphi 0, %s45
      %s32 = sphi 0, %s41
      %s33 = sphi 0, %s30
      %s34 = sphi 0, %s31
      %s35 = sphi 0, %s32
      %s36 = sphi 0, %s33
      %s37 = sphi 0, %s34
      %s38 = sphi 0, %s35
      %s56 = sphi 0, %s58
      %s59 = sphi 0, %s56
      %s60 = sphi 0, %s59
      %s76 = sphi 0, %s60
      %s86 = sphi 0, %s88
      %s89 = sphi 0, %s86
      %s90 = sphi 0, %s89
      %s106 = sphi 0, %s90
      %s114 = sphi 0, %s116
      %s117 = sphi 0, %s114
      %s118 = sphi 0, %s117
      %s134 = sphi 0, %s118
      %s142 = sphi 0, %s144
      %s145 = sphi 0, %s142
      %s146 = sphi 0, %s145
      %s162 = sphi 0, %s146
      %s170 = sphi 0, %s172
      %s173 = sphi 0, %s170
      %s174 = sphi 0, %s173
      %s190 = sphi 0, %s174
    $region4: #{tpu_custom_call.1} parent=1 // loop_header_branch
      %26 = sbr.rel (%p24) target = $region8
    $region5: #{tpu_custom_call.1} parent=1 // loop_body
      %s28 = ssub.s32 %s23, 1
      %s29 = ssub.s32 %s23, 2
      %s39 = sadd.s32 1, %s32
      %p40 = scmp.ge.s32.totalorder %s39, 1
      %s41 = scalar_select %p40, 0, %s39
      %s42 = sadd.s32 1, %s31
      %s43 = scalar_select %p40, %s42, %s31
      %p44 = scmp.ge.s32.totalorder %s43, 1
      %s45 = scalar_select %p44, 0, %s43
      %s46 = sadd.s32 1, %s30
      %s47 = scalar_select %p44, %s46, %s30
      %p48 = scmp.ge.s32.totalorder %s47, 2
      %s49 = scalar_select %p48, 0, %s47
      %s50 = sadd.s32 %s31, %s32
      %s51 = sadd.s32 %s45, %s41
      %s52 = ssub.s32 %s30, %s49
      %s53 = ssub.s32 %s50, %s51
      %s54 = sor.u32 %s52, %s53
      %p55 = scmp.eq.s32.totalorder %s54, 0
      %s57 = sadd.s32 %s56, 1
      %s58 = scalar_select %p55, %s56, %s57
      %p61 = pneg %p55
      %p62 = scmp.eq.s32.totalorder %s23, 1
      %p63 = por %p61, %p62
      %p64 = scmp.ne.s32.totalorder %s56, %s59
      %p65 = scmp.eq.s32.totalorder %s23, 0
      %p66 = por %p64, %p65
      %p67 = scmp.ne.s32.totalorder %s56, %s59
      %p68 = scmp.eq.s32.totalorder %s28, 1
      %p69 = por %p67, %p68
      %p70 = scmp.ne.s32.totalorder %s59, %s60
      %p71 = scmp.eq.s32.totalorder %s28, 0
      %p72 = por %p70, %p71
      %p73 = scmp.ne.s32.totalorder %s59, %s60
      %p74 = scmp.eq.s32.totalorder %s29, 1
      %p75 = por %p73, %p74
      %p77 = scmp.ne.s32.totalorder %s60, %s76
      %p78 = scmp.eq.s32.totalorder %s29, 0
      %p79 = por %p77, %p78
      %s80 = sadd.s32 %s31, %s32
      %s81 = sadd.s32 %s45, %s41
      %s82 = ssub.s32 %s30, %s49
      %s83 = ssub.s32 %s80, %s81
      %s84 = sor.u32 %s82, %s83
      %p85 = scmp.eq.s32.totalorder %s84, 0
      %s87 = sadd.s32 %s86, 1
      %s88 = scalar_select %p85, %s86, %s87
      %p91 = pneg %p85
      %p92 = scmp.eq.s32.totalorder %s23, 1
      %p93 = por %p91, %p92
      %p94 = scmp.ne.s32.totalorder %s86, %s89
      %p95 = scmp.eq.s32.totalorder %s23, 0
      %p96 = por %p94, %p95
      %p97 = scmp.ne.s32.totalorder %s86, %s89
      %p98 = scmp.eq.s32.totalorder %s28, 1
      %p99 = por %p97, %p98
      %p100 = scmp.ne.s32.totalorder %s89, %s90
      %p101 = scmp.eq.s32.totalorder %s28, 0
      %p102 = por %p100, %p101
      %p103 = scmp.ne.s32.totalorder %s89, %s90
      %p104 = scmp.eq.s32.totalorder %s29, 1
      %p105 = por %p103, %p104
      %p107 = scmp.ne.s32.totalorder %s90, %s106
      %p108 = scmp.eq.s32.totalorder %s29, 0
      %p109 = por %p107, %p108
      %s110 = ssub.s32 %s30, %s49
      %s111 = ssub.s32 %s31, %s45
      %s112 = sor.u32 %s110, %s111
      %p113 = scmp.eq.s32.totalorder %s112, 0
      %s115 = sadd.s32 %s114, 1
      %s116 = scalar_select %p113, %s114, %s115
      %p119 = pneg %p113
      %p120 = scmp.eq.s32.totalorder %s23, 1
      %p121 = por %p119, %p120
      %p122 = scmp.ne.s32.totalorder %s114, %s117
      %p123 = scmp.eq.s32.totalorder %s23, 0
      %p124 = por %p122, %p123
      %p125 = scmp.ne.s32.totalorder %s114, %s117
      %p126 = scmp.eq.s32.totalorder %s28, 1
      %p127 = por %p125, %p126
      %p128 = scmp.ne.s32.totalorder %s117, %s118
      %p129 = scmp.eq.s32.totalorder %s28, 0
      %p130 = por %p128, %p129
      %p131 = scmp.ne.s32.totalorder %s117, %s118
      %p132 = scmp.eq.s32.totalorder %s29, 1
      %p133 = por %p131, %p132
      %p135 = scmp.ne.s32.totalorder %s118, %s134
      %p136 = scmp.eq.s32.totalorder %s29, 0
      %p137 = por %p135, %p136
      %s138 = ssub.s32 %s30, %s49
      %s139 = ssub.s32 %s31, %s45
      %s140 = sor.u32 %s138, %s139
      %p141 = scmp.eq.s32.totalorder %s140, 0
      %s143 = sadd.s32 %s142, 1
      %s144 = scalar_select %p141, %s142, %s143
      %p147 = pneg %p141
      %p148 = scmp.eq.s32.totalorder %s23, 1
      %p149 = por %p147, %p148
      %p150 = scmp.ne.s32.totalorder %s142, %s145
      %p151 = scmp.eq.s32.totalorder %s23, 0
      %p152 = por %p150, %p151
      %p153 = scmp.ne.s32.totalorder %s142, %s145
      %p154 = scmp.eq.s32.totalorder %s28, 1
      %p155 = por %p153, %p154
      %p156 = scmp.ne.s32.totalorder %s145, %s146
      %p157 = scmp.eq.s32.totalorder %s28, 0
      %p158 = por %p156, %p157
      %p159 = scmp.ne.s32.totalorder %s145, %s146
      %p160 = scmp.eq.s32.totalorder %s29, 1
      %p161 = por %p159, %p160
      %p163 = scmp.ne.s32.totalorder %s146, %s162
      %p164 = scmp.eq.s32.totalorder %s29, 0
      %p165 = por %p163, %p164
      %s166 = ssub.s32 %s30, %s49
      %s167 = ssub.s32 %s31, %s45
      %s168 = sor.u32 %s166, %s167
      %p169 = scmp.eq.s32.totalorder %s168, 0
      %s171 = sadd.s32 %s170, 1
      %s172 = scalar_select %p169, %s170, %s171
      %p175 = pneg %p169
      %p176 = scmp.eq.s32.totalorder %s23, 1
      %p177 = por %p175, %p176
      %p178 = scmp.ne.s32.totalorder %s170, %s173
      %p179 = scmp.eq.s32.totalorder %s23, 0
      %p180 = por %p178, %p179
      %p181 = scmp.ne.s32.totalorder %s170, %s173
      %p182 = scmp.eq.s32.totalorder %s28, 1
      %p183 = por %p181, %p182
      %p184 = scmp.ne.s32.totalorder %s173, %s174
      %p185 = scmp.eq.s32.totalorder %s28, 0
      %p186 = por %p184, %p185
      %p187 = scmp.ne.s32.totalorder %s173, %s174
      %p188 = scmp.eq.s32.totalorder %s29, 1
      %p189 = por %p187, %p188
      %p191 = scmp.ne.s32.totalorder %s174, %s190
      %p192 = scmp.eq.s32.totalorder %s29, 0
      %p193 = por %p191, %p192
      %p194 = scmp.le.s32.totalorder 1, %s23
      %p195 = scmp.lt.s32.totalorder %s23, 3
      %p196 = pnand %p194, %p195
      %p197 = pneg %p196
      // Predicated region
      $region9: #{tpu_custom_call.1} parent=5 // pred_check
        _
      $region10: #{tpu_custom_call.1} parent=5 // pred_check_branch
        %199 = sbr.rel (%p196) target = $region12
      $region11: #{tpu_custom_call.1} parent=5 // pred_region
        %s200 = ssub.s32 %s23, 1
      $region12: #{tpu_custom_call.1} parent=5 // pred_fallthru
        _
      %p201 = scmp.lt.s32.totalorder %s23, 2
      // Predicated region
      $region13: #{tpu_custom_call.1} parent=5 // pred_check
        %p202 = pneg %p201
      $region14: #{tpu_custom_call.1} parent=5 // pred_check_branch
        %204 = sbr.rel (%p202) target = $region16
      $region15: #{tpu_custom_call.1} parent=5 // pred_region
        // Predicated region
        $region17: #{tpu_custom_call.1} parent=15 // pred_check
          %p205 = pneg %p66
        $region18: #{tpu_custom_call.1} parent=15 // pred_check_branch
          %207 = sbr.rel (%p205) target = $region20
        $region19: #{tpu_custom_call.1} parent=15 // pred_region
          %s208 = sand.u32 %s56, 1
          %s209 = scalar_lea.sflag [#allocation6], %s208
          %s210 = sand.u32 %s56, 1
          %s211 = smul.addr %s210, 16
          %s212 = scalar_lea.vmem [#allocation5], %s211
          %s213 = sadd.s32 %s31, %s32
          %s214 = smul.u32 2, %s30
          %s215 = smul.u32 2, %s213
          %s216 = ssub.s32 3, %s214
          %p217 = scmp.lt.s32.totalorder %s216, 2
          %s218 = scalar_select %p217, %s216, 2
          %s219 = smul.u32 64, %s218
          %s220 = smul.u32 %s219, 2
          %s222 = ssub.s32 256, %s220
          %223 = vsyncadd %s209, %s222
          %p224 = scmp.ne.s32.totalorder 0, %s220
          %s225 = smul.addr %s214, 2
          %s226 = sadd.s32 %s215, %s225
          %s227 = smul.addr %s226, 64
          %s228 = scalar_lea.hbm %s0, %s227
          %s229 = smul.u32 8, %s218
          %s230 = sshll.u32 %s212, 4
          %s231 = int_to_ptr.vmem [resolvable:$true] %s230
          %s232 = sshll.u32 %s229, 4
          %236 = dma.hbm_to_vmem [thread:$0]  (%p224), %s228, %s232, %s231, %s209, 128, 128, 8
        $region20: #{tpu_custom_call.1} parent=15 // pred_fallthru
          _
        // Predicated region
        $region21: #{tpu_custom_call.1} parent=15 // pred_check
          %p237 = pneg %p96
        $region22: #{tpu_custom_call.1} parent=15 // pred_check_branch
          %239 = sbr.rel (%p237) target = $region24
        $region23: #{tpu_custom_call.1} parent=15 // pred_region
          %s240 = sand.u32 %s86, 1
          %s241 = scalar_lea.sflag [#allocation9], %s240
          %s242 = sand.u32 %s86, 1
          %s243 = smul.addr %s242, 16
          %s244 = scalar_lea.vmem [#allocation8], %s243
          %s245 = sadd.s32 %s31, %s32
          %s246 = smul.u32 2, %s30
          %s247 = smul.u32 2, %s245
          %s248 = ssub.s32 3, %s246
          %p249 = scmp.lt.s32.totalorder %s248, 2
          %s250 = scalar_select %p249, %s248, 2
          %s251 = smul.u32 64, %s250
          %s252 = smul.u32 %s251, 2
          %s254 = ssub.s32 256, %s252
          %255 = vsyncadd %s241, %s254
          %p256 = scmp.ne.s32.totalorder 0, %s252
          %s257 = smul.addr %s246, 2
          %s258 = sadd.s32 %s247, %s257
          %s259 = smul.addr %s258, 64
          %s260 = scalar_lea.hbm %s1, %s259
          %s261 = smul.u32 8, %s250
          %s262 = sshll.u32 %s244, 4
          %s263 = int_to_ptr.vmem [resolvable:$true] %s262
          %s264 = sshll.u32 %s261, 4
          %268 = dma.hbm_to_vmem [thread:$0]  (%p256), %s260, %s264, %s263, %s241, 128, 128, 8
        $region24: #{tpu_custom_call.1} parent=15 // pred_fallthru
          _
      $region16: #{tpu_custom_call.1} parent=5 // pred_fallthru
        _
      %p269 = scmp.le.s32.totalorder 1, %s23
      %p270 = scmp.lt.s32.totalorder %s23, 3
      %p271 = pnand %p269, %p270
      %p272 = pneg %p271
      // Predicated region
      $region25: #{tpu_custom_call.1} parent=5 // pred_check
        _
      $region26: #{tpu_custom_call.1} parent=5 // pred_check_branch
        %274 = sbr.rel (%p271) target = $region28
      $region27: #{tpu_custom_call.1} parent=5 // pred_region
        %s275 = ssub.s32 %s23, 1
        %s276 = sand.u32 %s59, 1
        %s277 = scalar_lea.sflag [#allocation6], %s276
        %s278 = sand.u32 %s59, 1
        %s279 = smul.addr %s278, 16
        %s280 = scalar_lea.vmem [#allocation5], %s279
        // Predicated region
        $region29: #{tpu_custom_call.1} parent=27 // pred_check
          %p281 = pneg %p72
        $region30: #{tpu_custom_call.1} parent=27 // pred_check_branch
          %283 = sbr.rel (%p281) target = $region32
        $region31: #{tpu_custom_call.1} parent=27 // pred_region
          %284 = dma.done %s277, 256
        $region32: #{tpu_custom_call.1} parent=27 // pred_fallthru
          _
        %s285 = sand.u32 %s89, 1
        %s286 = scalar_lea.sflag [#allocation9], %s285
        %s287 = sand.u32 %s89, 1
        %s288 = smul.addr %s287, 16
        %s289 = scalar_lea.vmem [#allocation8], %s288
        // Predicated region
        $region33: #{tpu_custom_call.1} parent=27 // pred_check
          %p290 = pneg %p102
        $region34: #{tpu_custom_call.1} parent=27 // pred_check_branch
          %292 = sbr.rel (%p290) target = $region36
        $region35: #{tpu_custom_call.1} parent=27 // pred_region
          %293 = dma.done %s286, 256
        $region36: #{tpu_custom_call.1} parent=27 // pred_fallthru
          _
        %s294 = sand.u32 %s59, 1
        %s295 = scalar_lea.sflag [#allocation6], %s294
        %s296 = sand.u32 %s59, 1
        %s297 = smul.addr %s296, 16
        %s298 = scalar_lea.vmem [#allocation5], %s297
        %p299 = pneg %p72
        %p300 = pneg %p69
        %s301 = sand.u32 %s89, 1
        %s302 = scalar_lea.sflag [#allocation9], %s301
        %s303 = sand.u32 %s89, 1
        %s304 = smul.addr %s303, 16
        %s305 = scalar_lea.vmem [#allocation8], %s304
        %p306 = pneg %p102
        %p307 = pneg %p99
        %p308 = pneg %p130
        %p309 = pneg %p127
        %s310 = sand.u32 %s117, 1
        %s311 = scalar_lea.sflag [#allocation7], %s310
        %s312 = sand.u32 %s117, 1
        %s313 = scalar_lea.vmem [#allocation10], %s312
        %p314 = pneg %p158
        %p315 = pneg %p155
        %s316 = sand.u32 %s28, 1
        %s317 = scalar_lea.sflag [#allocation12], %s316
        %s318 = sand.u32 %s145, 1
        %s319 = scalar_lea.vmem [#allocation11], %s318
        %p320 = pneg %p186
        %p321 = pneg %p183
        %s322 = sand.u32 %s28, 1
        %s323 = scalar_lea.sflag [#allocation12], %s322
        %s324 = sand.u32 %s173, 1
        %s325 = scalar_lea.vmem [#allocation13], %s324
        %s326 = sadd.s32 %s34, %s35
        %s327 = smul.u32 2, %s33
        %s328 = smul.u32 2, %s326
        %s329 = ssub.s32 3, %s327
        %p330 = scmp.lt.s32.totalorder %s329, 2
        %s331 = scalar_select %p330, %s329, 2
        %s332 = smul.u32 64, %s331
        %s333 = smul.u32 %s332, 2
        %s334 = sadd.s32 %s34, %s35
        %s335 = smul.u32 2, %s33
        %s336 = smul.u32 2, %s334
        %s337 = ssub.s32 3, %s335
        %p338 = scmp.lt.s32.totalorder %s337, 2
        %s339 = scalar_select %p338, %s337, 2
        %s340 = smul.u32 64, %s339
        %s341 = smul.u32 %s340, 2
        %p342 = scmp.eq.s32.totalorder %s35, 0
        // Predicated region
        $region37: #{tpu_custom_call.1} parent=27 // pred_check
          %p343 = pneg %p342
        $region38: #{tpu_custom_call.1} parent=27 // pred_check_branch
          %345 = sbr.rel (%p343) target = $region40
        $region39: #{tpu_custom_call.1} parent=27 // pred_region
          %346 = vst [vmem:[#allocation2] sm:$0xf] 0.0
          %347 = vst [vmem:[#allocation3] sm:$0xf] 0.0
          %348 = vst [vmem:[#allocation4] sm:$0xf] 0.0
        $region40: #{tpu_custom_call.1} parent=27 // pred_fallthru
          _
        %v349 = vld [vmem:[%s280] sm:$0xff]
        %v350 = vld [vmem:[%s280 + $0x8] sm:$0xff]
        %v351 = vld [vmem:[%s289] sm:$0xff]
        %v352 = vld [vmem:[%s289 + $0x8] sm:$0xff]
        %v353 = vmul.f32 %v349, %v349
        %v354 = vmul.f32 %v350, %v350
        %v357 = vcombine.high %v353, %v353
        %v358 = vcombine.high %v354, %v354
        %vm361 = vcmask 1043456
        %v362 = vsel %vm361, %v353, 0.0
        %v363 = vrot.slane %v362, 4
        %v364 = vadd.f32 %v362, %v363
        %v365 = vrot.slane %v364, 2
        %v366 = vadd.f32 %v364, %v365
        %v367 = vrot.slane %v366, 1
        %v368 = vadd.f32 %v366, %v367
        %v369 = vsel %vm361, %v357, 0.0
        %v370 = vrot.slane %v369, 4
        %v371 = vadd.f32 %v369, %v370
        %v372 = vrot.slane %v371, 2
        %v373 = vadd.f32 %v371, %v372
        %v374 = vrot.slane %v373, 1
        %v375 = vadd.f32 %v373, %v374
        %v376 = vsel %vm361, %v354, 0.0
        %v377 = vrot.slane %v376, 4
        %v378 = vadd.f32 %v376, %v377
        %v379 = vrot.slane %v378, 2
        %v380 = vadd.f32 %v378, %v379
        %v381 = vrot.slane %v380, 1
        %v382 = vadd.f32 %v380, %v381
        %v383 = vsel %vm361, %v358, 0.0
        %v384 = vrot.slane %v383, 4
        %v385 = vadd.f32 %v383, %v384
        %v386 = vrot.slane %v385, 2
        %v387 = vadd.f32 %v385, %v386
        %v388 = vrot.slane %v387, 1
        %v389 = vadd.f32 %v387, %v388
        %v390 = vmul.f32 %v351, %v351
        %v391 = vmul.f32 %v352, %v352
        %v394 = vcombine.high %v390, %v390
        %v395 = vcombine.high %v391, %v391
        %v398 = vsel %vm361, %v390, 0.0
        %v399 = vrot.slane %v398, 4
        %v400 = vadd.f32 %v398, %v399
        %v401 = vrot.slane %v400, 2
        %v402 = vadd.f32 %v400, %v401
        %v403 = vrot.slane %v402, 1
        %v404 = vadd.f32 %v402, %v403
        %v405 = vsel %vm361, %v394, 0.0
        %v406 = vrot.slane %v405, 4
        %v407 = vadd.f32 %v405, %v406
        %v408 = vrot.slane %v407, 2
        %v409 = vadd.f32 %v407, %v408
        %v410 = vrot.slane %v409, 1
        %v411 = vadd.f32 %v409, %v410
        %v412 = vsel %vm361, %v391, 0.0
        %v413 = vrot.slane %v412, 4
        %v414 = vadd.f32 %v412, %v413
        %v415 = vrot.slane %v414, 2
        %v416 = vadd.f32 %v414, %v415
        %v417 = vrot.slane %v416, 1
        %v418 = vadd.f32 %v416, %v417
        %v419 = vsel %vm361, %v395, 0.0
        %v420 = vrot.slane %v419, 4
        %v421 = vadd.f32 %v419, %v420
        %v422 = vrot.slane %v421, 2
        %v423 = vadd.f32 %v421, %v422
        %v424 = vrot.slane %v423, 1
        %v425 = vadd.f32 %v423, %v424
        %v426 = vlaneseq
        %v427 = vshrl.u32 %v426, 7
        %s428 = smul.u32 %s33, 2
        %v429 = vstv %s428
        %v430 = vadd.s32 %v429, %v427
        %vm431 = vcmp.lt.s32.totalorder %v430, 3
        %vm436 = vcmask 1041409
        %v437 = vsel %vm436, %v382, %v368
        %v438 = vsel %vm436, %v389, %v375
        %v441 = vsel %vm431, %v437, 0.0
        %v442 = vsel %vm431, %v438, 0.0
        %v447 = vsel %vm436, %v418, %v404
        %v448 = vsel %vm436, %v425, %v411
        %v451 = vsel %vm431, %v447, 0.0
        %v452 = vsel %vm431, %v448, 0.0
        %v453 = vld [vmem:[#allocation2] sm:$0xf]
        %v454 = vmul.f32 %v441, %v441
        %v455 = vmul.f32 %v442, %v442
        %v458 = vcombine.low %v454, %v455
        %v460 = vunpack.c.l.s4 1983009808
        %v461 = vunpack.c.0.s8 %v460
        %v462 = vlaneseq
        %v463 = vshrl.u32 %v462, 7
        %v464 = vsub.s32 %v461, %v463
        %v465 = vrot.slane %v458, %v464
        %v467 = vadd.f32 %v453, %v465
        %468 = vst [vmem:[#allocation2] sm:$0xf] %v467
        %v469 = vld [vmem:[#allocation3] sm:$0xf]
        %v470 = vmul.f32 %v451, %v451
        %v471 = vmul.f32 %v452, %v452
        %v474 = vcombine.low %v470, %v471
        %v476 = vunpack.c.l.s4 1983009808
        %v477 = vunpack.c.0.s8 %v476
        %v478 = vlaneseq
        %v479 = vshrl.u32 %v478, 7
        %v480 = vsub.s32 %v477, %v479
        %v481 = vrot.slane %v474, %v480
        %v483 = vadd.f32 %v469, %v481
        %484 = vst [vmem:[#allocation3] sm:$0xf] %v483
        %v485 = vld [vmem:[#allocation4] sm:$0xf]
        %v486 = vmul.f32 %v441, %v451
        %v487 = vmul.f32 %v442, %v452
        %v490 = vcombine.low %v486, %v487
        %v492 = vunpack.c.l.s4 1983009808
        %v493 = vunpack.c.0.s8 %v492
        %v494 = vlaneseq
        %v495 = vshrl.u32 %v494, 7
        %v496 = vsub.s32 %v493, %v495
        %v497 = vrot.slane %v490, %v496
        %v499 = vadd.f32 %v485, %v497
        %500 = vst [vmem:[#allocation4] sm:$0xf] %v499
        // Predicated region
        $region41: #{tpu_custom_call.1} parent=27 // pred_check
          %p501 = pneg %p342
        $region42: #{tpu_custom_call.1} parent=27 // pred_check_branch
          %503 = sbr.rel (%p501) target = $region44
        $region43: #{tpu_custom_call.1} parent=27 // pred_region
          %v504 = vld [vmem:[#allocation2] sm:$0xf]
          %v507 = vunpack.c.l.s4 1983009808
          %v508 = vunpack.c.0.s8 %v507
          %v509 = vlaneseq
          %v510 = vshrl.u32 %v509, 7
          %v511 = vsub.s32 %v508, %v510
          %v512 = vrot.slane %v504, %v511
          %v513 = vcombine.high %v512, %v512
          %vm516 = vcmask 1041408
          %v517 = vsel %vm516, %v512, 0.0
          %v518 = vsel %vm516, %v513, 0.0
          %v519 = vadd.f32 %v517, %v518
          %520 = vadd.xlane.f32.xlu0 %v519
          %v521 = vpop.xlane.xlu0 %520
          %v523 = vlaneseq
          %v524 = vand.u32 %v523, 127
          %v525 = vlaneseq
          %v526 = vshrl.u32 %v525, 7
          %v527 = vsub.s32 %v524, %v526
          %v528 = vrot.slane %v521, %v527
          %vm530 = vcmask 8192
          %531 = vst.msk [vmem:[%s313] sm:$0x1] %vm530, %v528
          %v532 = vld [vmem:[#allocation3] sm:$0xf]
          %v535 = vunpack.c.l.s4 1983009808
          %v536 = vunpack.c.0.s8 %v535
          %v537 = vlaneseq
          %v538 = vshrl.u32 %v537, 7
          %v539 = vsub.s32 %v536, %v538
          %v540 = vrot.slane %v532, %v539
          %v541 = vcombine.high %v540, %v540
          %v544 = vsel %vm516, %v540, 0.0
          %v545 = vsel %vm516, %v541, 0.0
          %v546 = vadd.f32 %v544, %v545
          %547 = vadd.xlane.f32.xlu0 %v546
          %v548 = vpop.xlane.xlu0 %547
          %v550 = vlaneseq
          %v551 = vshrl.u32 %v550, 7
          %v552 = vsub.s32 %v524, %v551
          %v553 = vrot.slane %v548, %v552
          %555 = vst.msk [vmem:[%s319] sm:$0x1] %vm530, %v553
          %v556 = vld [vmem:[#allocation4] sm:$0xf]
          %v559 = vunpack.c.l.s4 1983009808
          %v560 = vunpack.c.0.s8 %v559
          %v561 = vlaneseq
          %v562 = vshrl.u32 %v561, 7
          %v563 = vsub.s32 %v560, %v562
          %v564 = vrot.slane %v556, %v563
          %v565 = vcombine.high %v564, %v564
          %v568 = vsel %vm516, %v564, 0.0
          %v569 = vsel %vm516, %v565, 0.0
          %v570 = vadd.f32 %v568, %v569
          %571 = vadd.xlane.f32.xlu0 %v570
          %v572 = vpop.xlane.xlu0 %571
          %v574 = vlaneseq
          %v575 = vshrl.u32 %v574, 7
          %v576 = vsub.s32 %v524, %v575
          %v577 = vrot.slane %v572, %v576
          %579 = vst.msk [vmem:[%s325] sm:$0x1] %vm530, %v577
        $region44: #{tpu_custom_call.1} parent=27 // pred_fallthru
          _
        %s580 = sand.u32 %s117, 1
        %s581 = scalar_lea.sflag [#allocation7], %s580
        %s582 = sand.u32 %s117, 1
        %s583 = scalar_lea.vmem [#allocation10], %s582
        %s584 = sand.u32 %s28, 1
        %s585 = scalar_lea.sflag [#allocation12], %s584
        %s586 = sand.u32 %s145, 1
        %s587 = scalar_lea.vmem [#allocation11], %s586
        %s588 = sand.u32 %s28, 1
        %s589 = scalar_lea.sflag [#allocation12], %s588
        %s590 = sand.u32 %s173, 1
        %s591 = scalar_lea.vmem [#allocation13], %s590
        // Predicated region
        $region45: #{tpu_custom_call.1} parent=27 // pred_check
          %p592 = pneg %p127
        $region46: #{tpu_custom_call.1} parent=27 // pred_check_branch
          %594 = sbr.rel (%p592) target = $region48
        $region47: #{tpu_custom_call.1} parent=27 // pred_region
          %s596 = ssub.s32 16, 16
          %597 = vsyncadd %s581, %s596
          %s598 = sadd.s32 %s34, %s33
          %s599 = smul.addr %s598, 16
          %s600 = scalar_lea.hbm %s2, %s599
          %s602 = sshll.u32 %s583, 4
          %s603 = int_to_ptr.vmem [resolvable:$true] %s602
          %605 = dma.vmem_to_hbm [thread:$0]  %s603, 16, %s600, %s581
        $region48: #{tpu_custom_call.1} parent=27 // pred_fallthru
          _
        // Predicated region
        $region49: #{tpu_custom_call.1} parent=27 // pred_check
          %p606 = pneg %p155
        $region50: #{tpu_custom_call.1} parent=27 // pred_check_branch
          %608 = sbr.rel (%p606) target = $region52
        $region51: #{tpu_custom_call.1} parent=27 // pred_region
          %s610 = ssub.s32 16, 16
          %611 = vsyncadd %s585, %s610
          %s612 = sadd.s32 %s34, %s33
          %s613 = smul.addr %s612, 16
          %s614 = scalar_lea.hbm %s3, %s613
          %s616 = sshll.u32 %s587, 4
          %s617 = int_to_ptr.vmem [resolvable:$true] %s616
          %619 = dma.vmem_to_hbm [thread:$0]  %s617, 16, %s614, %s585
        $region52: #{tpu_custom_call.1} parent=27 // pred_fallthru
          _
        // Predicated region
        $region53: #{tpu_custom_call.1} parent=27 // pred_check
          %p620 = pneg %p183
        $region54: #{tpu_custom_call.1} parent=27 // pred_check_branch
          %622 = sbr.rel (%p620) target = $region56
        $region55: #{tpu_custom_call.1} parent=27 // pred_region
          %s624 = ssub.s32 16, 16
          %625 = vsyncadd %s589, %s624
          %s626 = sadd.s32 %s34, %s33
          %s627 = smul.addr %s626, 16
          %s628 = scalar_lea.hbm %s4, %s627
          %s630 = sshll.u32 %s591, 4
          %s631 = int_to_ptr.vmem [resolvable:$true] %s630
          %633 = dma.vmem_to_hbm [thread:$0]  %s631, 16, %s628, %s589
        $region56: #{tpu_custom_call.1} parent=27 // pred_fallthru
          _
      $region28: #{tpu_custom_call.1} parent=5 // pred_fallthru
        _
      %p634 = scmp.le.s32.totalorder 2, %s23
      // Predicated region
      $region57: #{tpu_custom_call.1} parent=5 // pred_check
        %p635 = pneg %p634
      $region58: #{tpu_custom_call.1} parent=5 // pred_check_branch
        %637 = sbr.rel (%p635) target = $region60
      $region59: #{tpu_custom_call.1} parent=5 // pred_region
        %s638 = ssub.s32 %s23, 2
        // Predicated region
        $region61: #{tpu_custom_call.1} parent=59 // pred_check
          %p639 = pneg %p133
        $region62: #{tpu_custom_call.1} parent=59 // pred_check_branch
          %641 = sbr.rel (%p639) target = $region64
        $region63: #{tpu_custom_call.1} parent=59 // pred_region
          %s642 = sand.u32 %s118, 1
          %s643 = scalar_lea.sflag [#allocation7], %s642
          %s644 = sand.u32 %s118, 1
          %s645 = scalar_lea.vmem [#allocation10], %s644
          %646 = dma.done %s643, 16
        $region64: #{tpu_custom_call.1} parent=59 // pred_fallthru
          _
        // Predicated region
        $region65: #{tpu_custom_call.1} parent=59 // pred_check
          %p647 = pneg %p161
        $region66: #{tpu_custom_call.1} parent=59 // pred_check_branch
          %649 = sbr.rel (%p647) target = $region68
        $region67: #{tpu_custom_call.1} parent=59 // pred_region
          %s650 = sand.u32 %s29, 1
          %s651 = scalar_lea.sflag [#allocation12], %s650
          %s652 = sand.u32 %s146, 1
          %s653 = scalar_lea.vmem [#allocation11], %s652
          %654 = dma.done %s651, 16
        $region68: #{tpu_custom_call.1} parent=59 // pred_fallthru
          _
        // Predicated region
        $region69: #{tpu_custom_call.1} parent=59 // pred_check
          %p655 = pneg %p189
        $region70: #{tpu_custom_call.1} parent=59 // pred_check_branch
          %657 = sbr.rel (%p655) target = $region72
        $region71: #{tpu_custom_call.1} parent=59 // pred_region
          %s658 = sand.u32 %s29, 1
          %s659 = scalar_lea.sflag [#allocation12], %s658
          %s660 = sand.u32 %s174, 1
          %s661 = scalar_lea.vmem [#allocation13], %s660
          %662 = dma.done %s659, 16
        $region72: #{tpu_custom_call.1} parent=59 // pred_fallthru
          _
      $region60: #{tpu_custom_call.1} parent=5 // pred_fallthru
        _
    $region6: #{tpu_custom_call.1} parent=1 // loop_footer
      %s27 = sadd.s32 1, %s23
    $region7: #{tpu_custom_call.1} parent=1 // loop_footer_branch
      %22 = sbr.rel target = $region3
    $region8: #{tpu_custom_call.1} parent=1 // loop_exit
      _
    %663 = vsyncpa [#allocation6], 1
    %s664 = scalar_lea.sflag [#allocation6], 1
    %665 = vsyncpa %s664, 1
    %666 = vsyncpa [#allocation9], 1
    %s667 = scalar_lea.sflag [#allocation9], 1
    %668 = vsyncpa %s667, 1
    %669 = vsyncpa [#allocation7], 1
    %s670 = scalar_lea.sflag [#allocation7], 1
    %671 = vsyncpa %s670, 1
    %672 = vsyncpa [#allocation12], 1
    %s673 = scalar_lea.sflag [#allocation12], 1
    %674 = vsyncpa %s673, 1

</llo_original>
